<compile_context>
chip_gen: v5e
topology: v5e:2x2
jax: 0.10.0
libtpu: 0.0.40
codegen_flags: <defaults>
</compile_context>

<pallas_src>
import functools
import math

import jax
import jax.numpy as jnp
from jax import lax
from jax.experimental import pallas as pl
from jax.experimental.pallas import tpu as pltpu

EPS = 1e-8  # nn.CosineSimilarity default


# --------------------------------------------------------------------------- #
# Per-generation VMEM budgets
# --------------------------------------------------------------------------- #
def _vmem_capacity_bytes():
    """Per-TensorCore VMEM capacity (v5e/v6e: 128 MiB, v7x: 64 MiB)."""
    try:
        cap = int(pltpu.get_tpu_info().vmem_capacity_bytes)
        if cap > 0:
            return max(min(cap, 128 * 1024 * 1024), 32 * 1024 * 1024)
    except Exception:
        pass
    return 64 * 1024 * 1024  # conservative default (v7x per-TC VMEM)


_VMEM_CAP = _vmem_capacity_bytes()
_VMEM_LIMIT = int(_VMEM_CAP * 0.8)      # scoped-VMEM request; headroom for compiler scratch
_WORK_BUDGET = int(_VMEM_LIMIT * 0.7)   # double-buffered tiles + in-kernel temporaries


def _sublane_align(itemsize):
    # minimum sublane tiling per element width (f32 -> 8, bf16 -> 16, int8/fp8 -> 32)
    return {4: 8, 2: 16, 1: 32}.get(int(itemsize), 8)


# --------------------------------------------------------------------------- #
# Kernels
# --------------------------------------------------------------------------- #
def _inv_norm_kernel(x_ref, o_ref):
    # x_ref: (tile_n, H); o_ref: (tile_n, 1) = 1 / max(||row||, eps)
    x = x_ref[...].astype(jnp.float32)
    s = jnp.sum(x * x, axis=-1, keepdims=True)
    # max(||x||, eps) == sqrt(max(sum(x^2), eps^2)) -> single rsqrt on the EUP.
    # NOTE: torch clamps the *product* of norms at eps; clamping each norm is
    # indistinguishable unless one norm is < 1e-8 while the other is large.
    o_ref[...] = lax.rsqrt(jnp.maximum(s, EPS * EPS))


def _cos_rows_kernel(x_ref, y_ref, o_ref, *, inv_temp):
    # x_ref / y_ref: (tile_n, H) or a resident (1, H) broadcast block.
    x = x_ref[...].astype(jnp.float32)
    y = y_ref[...].astype(jnp.float32)
    dot = jnp.sum(x * y, axis=-1, keepdims=True)
    sx = jnp.sum(x * x, axis=-1, keepdims=True)
    sy = jnp.sum(y * y, axis=-1, keepdims=True)
    # One rsqrt (EUP), the rest VPU muls, no divides.
    inv_denom = lax.rsqrt(jnp.maximum(sx, EPS * EPS) * jnp.maximum(sy, EPS * EPS))
    o_ref[...] = (dot * inv_denom * inv_temp).astype(o_ref.dtype)


def _cos_matrix_kernel(x_ref, y_ref, inx_ref, iny_ref, o_ref, *, inv_temp, precision):
    # x_ref: (tm, tk), y_ref: (tn, tk) in native dtype (bf16 stays bf16).
    # inx_ref: (tm, 1), iny_ref: (1, tn) f32 inverse norms; o_ref: (tm, tn) f32.
    k = pl.program_id(2)

    @pl.when(k == 0)
    def _():
        o_ref[...] = jnp.zeros_like(o_ref)

    x = x_ref[...]
    y = y_ref[...]
    if x.dtype != y.dtype:              # mixed-dtype edge case: promote once
        x = x.astype(jnp.float32)
        y = y.astype(jnp.float32)

    # (tm, tk) . (tn, tk)^T on the MXU; f32 accumulation in the resident output.
    o_ref[...] += lax.dot_general(
        x, y,
        dimension_numbers=(((1,), (1,)), ((), ())),
        preferred_element_type=jnp.float32,
        precision=precision,
    )

    @pl.when(k == pl.num_programs(2) - 1)
    def _():
        # Post-scale: O(tm*tn) VPU work hidden under the MXU; replaces per-tile
        # re-normalization of the (tm,H)/(tn,H) operands.
        o_ref[...] = o_ref[...] * (inx_ref[...] * inv_temp) * iny_ref[...]


# --------------------------------------------------------------------------- #
# Tile selection
# --------------------------------------------------------------------------- #
def _rows_tile(N, H, itemsize, n_streams):
    align = _sublane_align(itemsize)
    # n_streams streamed inputs x 2 pipeline buffers + in-kernel f32 temporaries.
    per_row = max(H * (2 * n_streams * itemsize + 4 * (n_streams + 1)), 1)
    t = min(_WORK_BUDGET // per_row, 32768)
    t = max((t // align) * align, align)
    if t >= N:
        if N >= 2 * align:
            # keep >= 2 grid blocks so both v7x TensorCores get a share
            t = align * (-(-N // (2 * align)))
        else:
            t = N                        # full-extent block is always legal
    return t


def _matrix_tiles(B1, B2, H, xsz, ysz):
    cdiv = lambda a, b: -(-a // b)
    # Full-extent blocks are always layout-legal; tiled blocks keep (8,128) alignment.
    tm_c = ([B1] if B1 <= 256 else []) + [c for c in (256, 128, 64, 32, 16, 8) if c < B1]
    tn_c = ([B2] if B2 <= 512 else []) + [c for c in (512, 256, 128) if c < B2]
    tk_c = [H] + ([c for c in (2048, 1024, 512, 256, 128) if c < H and H % c == 0]
                  if H % 128 == 0 else [])
    im = jn = ik = 0

    # v7x has 2 TensorCores: make sure a "parallel" axis has >= 2 blocks.
    if cdiv(B1, tm_c[im]) == 1 and cdiv(B2, tn_c[jn]) == 1:
        if len(tn_c) > 1:
            jn = 1
        elif len(tm_c) > 1:
            im = 1

    def usage():
        tm, tn, tk = tm_c[im], tn_c[jn], tk_c[ik]
        # 2x pipeline buffers for x / y / inv-norm inputs and the f32 output
        # block, plus the in-kernel f32 matmul temporary.
        return 2 * tk * (tm * xsz + tn * ysz) + 8 * (tm + tn) + 12 * tm * tn

    while usage() > _WORK_BUDGET:
        if ik + 1 < len(tk_c):      # first lever: tile the contraction axis
            ik += 1
        elif jn + 1 < len(tn_c):    # then shrink the output tile
            jn += 1
        elif im + 1 < len(tm_c):
            im += 1
        else:
            break
    return tm_c[im], tn_c[jn], tk_c[ik]


# --------------------------------------------------------------------------- #
# pallas_call wrappers
# --------------------------------------------------------------------------- #
def _row_inv_norms(a):
    """Prologue: (N, H) -> (N, 1) inverse norms, each row read exactly once."""
    N, H = a.shape
    tile_n = _rows_tile(N, H, jnp.dtype(a.dtype).itemsize, n_streams=1)
    return pl.pallas_call(
        _inv_norm_kernel,
        out_shape=jax.ShapeDtypeStruct((N, 1), jnp.float32),
        grid_spec=pltpu.PrefetchScalarGridSpec(
            num_scalar_prefetch=0,
            grid=(pl.cdiv(N, tile_n),),
            in_specs=[pl.BlockSpec((tile_n, H), lambda i: (i, 0))],
            out_specs=pl.BlockSpec((tile_n, 1), lambda i: (i, 0)),
        ),
        compiler_params=pltpu.CompilerParams(
            dimension_semantics=("parallel",),
            vmem_limit_bytes=_VMEM_LIMIT,
        ),
    )(a)


def _cos_rows(xb, yb, inv_temp):
    N = max(xb.shape[0], yb.shape[0])
    H = xb.shape[1]
    itemsize = max(jnp.dtype(xb.dtype).itemsize, jnp.dtype(yb.dtype).itemsize)
    n_streams = max(1, int(xb.shape[0] > 1) + int(yb.shape[0] > 1))
    tile_n = _rows_tile(N, H, itemsize, n_streams=n_streams)

    def spec(a):
        if a.shape[0] == 1 and N > 1:
            # broadcast operand: single resident (1, H) block, no materialization
            return pl.BlockSpec((1, H), lambda i: (0, 0))
        return pl.BlockSpec((tile_n, H), lambda i: (i, 0))

    kernel = functools.partial(_cos_rows_kernel, inv_temp=inv_temp)
    out = pl.pallas_call(
        kernel,
        out_shape=jax.ShapeDtypeStruct((N, 1), jnp.float32),
        grid_spec=pltpu.PrefetchScalarGridSpec(
            num_scalar_prefetch=0,
            grid=(pl.cdiv(N, tile_n),),
            in_specs=[spec(xb), spec(yb)],
            # (tile_n, 1) store: this path is HBM-read-bound (store bytes are
            # ~1/(2H) of the streamed input bytes), so the narrow store is kept
            # in favour of a transpose-free kernel body.
            out_specs=pl.BlockSpec((tile_n, 1), lambda i: (i, 0)),
        ),
        compiler_params=pltpu.CompilerParams(
            dimension_semantics=("parallel",),
            vmem_limit_bytes=_VMEM_LIMIT,
        ),
    )(xb, yb)
    return out[:, 0]


def _cos_matrix(xm, ym, inv_temp):
    B1, H = xm.shape
    B2, _ = ym.shape
    xsz = jnp.dtype(xm.dtype).itemsize
    ysz = jnp.dtype(ym.dtype).itemsize
    tm, tn, tk = _matrix_tiles(B1, B2, H, xsz, ysz)

    # Hoisted normalization: per-row inverse norms computed once, applied as a
    # post-scale of the MXU output.
    inv_nx = _row_inv_norms(xm)                  # (B1, 1)
    inv_ny = _row_inv_norms(ym).reshape(1, B2)   # (1, B2), lane-dense row

    any_f32 = (xm.dtype == jnp.float32 or ym.dtype == jnp.float32
               or xm.dtype != ym.dtype)
    # f32 operands: 3-pass HIGH decomposition (not 6-pass HIGHEST);
    # bf16 operands: native single-pass MXU matmul with f32 accumulation.
    precision = lax.Precision.HIGH if any_f32 else None

    kernel = functools.partial(_cos_matrix_kernel, inv_temp=inv_temp,
                               precision=precision)
    return pl.pallas_call(
        kernel,
        out_shape=jax.ShapeDtypeStruct((B1, B2), jnp.float32),
        grid_spec=pltpu.PrefetchScalarGridSpec(
            num_scalar_prefetch=0,
            grid=(pl.cdiv(B1, tm), pl.cdiv(B2, tn), pl.cdiv(H, tk)),
            in_specs=[
                # x block index is constant across the inner j axis (and k when
                # H is un-tiled) -> stays VMEM-resident, no re-DMA.
                pl.BlockSpec((tm, tk), lambda i, j, k: (i, k)),
                pl.BlockSpec((tn, tk), lambda i, j, k: (j, k)),
                pl.BlockSpec((tm, 1), lambda i, j, k: (i, 0)),
                pl.BlockSpec((1, tn), lambda i, j, k: (0, j)),
            ],
            out_specs=pl.BlockSpec((tm, tn), lambda i, j, k: (i, j)),  # lane-dense
        ),
        compiler_params=pltpu.CompilerParams(
            dimension_semantics=("parallel", "parallel", "arbitrary"),
            vmem_limit_bytes=_VMEM_LIMIT,
        ),
    )(xm, ym, inv_nx, inv_ny)


# --------------------------------------------------------------------------- #
# Public entry point (matches Similarity.forward semantics)
# --------------------------------------------------------------------------- #
def similarity(x, y, temp):
    """cos(x, y, dim=-1) / temp with PyTorch-style broadcasting. Returns f32."""
    x = jnp.asarray(x)
    y = jnp.asarray(y)
    out_full = jnp.broadcast_shapes(x.shape, y.shape)
    lead_shape = out_full[:-1] if out_full else ()
    H = out_full[-1] if out_full else 1
    inv_temp = 1.0 / float(temp)

    if any(d == 0 for d in out_full) or H == 0:
        return jnp.zeros(lead_shape, jnp.float32)

    # Fast path: SimCSE outer product (B1,1,H) x (1,B2,H) -> (B1,B2) (MXU).
    if (x.ndim == 3 and y.ndim == 3
            and x.shape[-1] == H and y.shape[-1] == H):
        if x.shape[1] == 1 and y.shape[0] == 1:
            return _cos_matrix(x.reshape(x.shape[0], H),
                               y.reshape(y.shape[1], H), inv_temp)
        if x.shape[0] == 1 and y.shape[1] == 1:
            return _cos_matrix(y.reshape(y.shape[0], H),
                               x.reshape(x.shape[1], H), inv_temp)

    # General row-wise path.
    N = math.prod(lead_shape) if lead_shape else 1

    def as_rows(a):
        if a.shape == out_full:
            return a.reshape(N, H)      # no broadcast needed; reshape is free
        if a.ndim > 0 and a.shape[-1] == H and math.prod(a.shape[:-1]) == 1:
            return a.reshape(1, H)      # broadcast handled by a resident block
        # TODO(synk): fold regular repeat patterns into the row BlockSpec
        # index_map instead of materializing the broadcast in HBM.
        return jnp.broadcast_to(a, out_full).reshape(N, H)

    res = _cos_rows(as_rows(x), as_rows(y), inv_temp)
    return res.reshape(lead_shape)


def similarity_ref(x, y, temp):
    """Pure-JAX reference matching torch.nn.CosineSimilarity semantics."""
    x = x.astype(jnp.float32)
    y = y.astype(jnp.float32)
    dot = jnp.sum(x * y, axis=-1)
    nx = jnp.sqrt(jnp.sum(x * x, axis=-1))
    ny = jnp.sqrt(jnp.sum(y * y, axis=-1))
    return dot / (jnp.maximum(nx, EPS) * jnp.maximum(ny, EPS)) / temp


if __name__ == "__main__":
    key = jax.random.PRNGKey(0)
    k1, k2, k3, k4 = jax.random.split(key, 4)

    temp = 0.05          # typical SimCSE temperature
    B, H = 8, 32

    # 1) SimCSE similarity matrix: x (B,1,H) vs y (1,B,H) -> (B,B)  [MXU path]
    x1 = jax.random.normal(k1, (B, 1, H), dtype=jnp.float32)
    y1 = jax.random.normal(k2, (1, B, H), dtype=jnp.float32)
    out1 = jax.block_until_ready(similarity(x1, y1, temp))
    ref1 = similarity_ref(x1, y1, temp)
    assert out1.shape == (B, B), out1.shape
    err1 = float(jnp.max(jnp.abs(out1 - ref1)) * temp)   # compare at cosine scale
    assert err1 < 5e-3, err1

    # 2) Same-shape case: x,y (2,B,H) -> (2,B)  [row path]
    x2 = jax.random.normal(k3, (2, B, H), dtype=jnp.float32)
    y2 = jax.random.normal(k4, (2, B, H), dtype=jnp.float32)
    out2 = jax.block_until_ready(similarity(x2, y2, temp))
    ref2 = similarity_ref(x2, y2, temp)
    assert out2.shape == (2, B), out2.shape
    assert jnp.allclose(out2, ref2, atol=1e-4, rtol=1e-4), (
        float(jnp.max(jnp.abs(out2 - ref2))))

    # 3) Single-vector broadcast: x (B,H) vs y (H,) -> (B,)  [row path, resident y]
    x3 = jax.random.normal(k1, (B, H), dtype=jnp.float32)
    y3 = jax.random.normal(k2, (H,), dtype=jnp.float32)
    out3 = jax.block_until_ready(similarity(x3, y3, temp))
    ref3 = similarity_ref(x3, y3, temp)
    assert out3.shape == (B,), out3.shape
    assert jnp.allclose(out3, ref3, atol=1e-4, rtol=1e-4), (
        float(jnp.max(jnp.abs(out3 - ref3))))

    print("KERNEL_OK")
</pallas_src>

<mosaic_0001>
module attributes {stable_mosaic.version = 11 : i64} {
  func.func @_inv_norm_kernel(%arg0: i32, %arg1: memref<8x32xf32, #tpu.memory_space<vmem>>, %arg2: memref<8x1xf32, #tpu.memory_space<vmem>>) attributes {dimension_semantics = [#tpu.dimension_semantics<parallel>], iteration_bounds = array<i64: 1>, scalar_prefetch = 0 : i64, scratch_operands = 0 : i64, tpu.core_type = #tpu.core_type<tc>, window_params = [{transform_indices = @transform_0, window_bounds = array<i64: 8, 32>}, {transform_indices = @transform_1, window_bounds = array<i64: 8, 1>}]} {
    %c0 = arith.constant 0 : index
    %c0_0 = arith.constant 0 : index
    %0 = vector.load %arg1[%c0, %c0_0] : memref<8x32xf32, #tpu.memory_space<vmem>>, vector<8x32xf32>
    %1 = arith.mulf %0, %0 : vector<8x32xf32>
    %cst = arith.constant dense<0.000000e+00> : vector<8xf32>
    %2 = vector.multi_reduction <add>, %1, %cst [1] : vector<8x32xf32> to vector<8xf32>
    %3 = vector.shape_cast %2 : vector<8xf32> to vector<8x1xf32>
    %cst_1 = arith.constant 1.000000e-16 : f32
    %4 = vector.broadcast %cst_1 : f32 to vector<8x1xf32>
    %5 = arith.maximumf %3, %4 : vector<8x1xf32>
    %6 = math.rsqrt %5 : vector<8x1xf32>
    %c0_2 = arith.constant 0 : index
    %c0_3 = arith.constant 0 : index
    %7 = vector.load %arg2[%c0_2, %c0_3] : memref<8x1xf32, #tpu.memory_space<vmem>>, vector<8x1xf32>
    tpu.vector_store %arg2[%c0_2, %c0_3], %6 {strides = array<i32>} : memref<8x1xf32, #tpu.memory_space<vmem>>, vector<8x1xf32>,
    return
  }
  func.func @transform_0(%arg0: i32) -> (i32, i32) {
    %c0_i32 = arith.constant 0 : i32
    %c0_i32_0 = arith.constant 0 : i32
    return %arg0, %c0_i32 : i32, i32
  }
  func.func @transform_1(%arg0: i32) -> (i32, i32) {
    %c0_i32 = arith.constant 0 : i32
    %c0_i32_0 = arith.constant 0 : i32
    return %arg0, %c0_i32 : i32, i32
  }
}

</mosaic_0001>

<llo_original>
// kernel: tpu_custom_call.1
$region0: #{tpu_custom_call.1}
  #allocation0 [shape = 'u32[]', space=smem, size = 0x4, offset = 0x4, fixed_abs, tag = 'smem constant byte address 0x4 - core index']
  #allocation1 [shape = 'u32[72,128]{1,0:T(1,128)}', space=vmem, size = 0x9000, scoped, tag = 'internal scratch']
  %s0 = inlined_call_operand.hbm [shape: f32[8,32], index: 0, kind: input, shape index: {}]
  %s1 = inlined_call_operand.vmem [shape: f32[8,1], index: 1, kind: output, shape index: {}]
  %s2 = sld [smem:[#allocation0]]
  $region18: #{tpu_custom_call.1} parent=0
    _
  %s4 = ssub.s32 1, %s2
  %s5 = scalar_select 0, %s4, %s2
  $region1: #{tpu_custom_call.1} parent=0
    #allocation2 [shape = 'u8[4096]{0}', space=vmem, size = 0x1000, scoped, tag = 'input window, operand 0, single buffered']
    #allocation3 [shape = 's32[1]{0}', space=sflag, size = 0x4, scoped, tag = 'scoped memory for tpu_custom_call.1']
    %6 = vsyncpa [#allocation3], 0
    // Predicated region
    $region2: #{tpu_custom_call.1} parent=1 // pred_check
      _
    $region3: #{tpu_custom_call.1} parent=1 // pred_check_branch
      %8 = sbr.rel (0) target = $region5
    $region4: #{tpu_custom_call.1} parent=1 // pred_region
      %10 = vsyncadd [#allocation3], 0
      %s12 = sshll.u32 %s0, 4
      %s13 = int_to_ptr.hbm [resolvable:$true] %s12
      %s14 = sshll.u32 [#allocation2], 4
      %s15 = int_to_ptr.vmem [resolvable:$true] %s14
      %17 = dma.hbm_to_vmem [thread:$0]  %s13, 128, %s15, [#allocation3]
    $region5: #{tpu_custom_call.1} parent=1 // pred_fallthru
      _
    // Predicated region
    $region6: #{tpu_custom_call.1} parent=1 // pred_check
      _
    $region7: #{tpu_custom_call.1} parent=1 // pred_check_branch
      %19 = sbr.rel (0) target = $region9
    $region8: #{tpu_custom_call.1} parent=1 // pred_region
      %21 = dma.done [#allocation3], 128
    $region9: #{tpu_custom_call.1} parent=1 // pred_fallthru
      _
    %v22 = vld [vmem:[#allocation2] sm:$0xff]
    %v23 = vmul.f32 %v22, %v22
    %vm24 = vcmask 261120
    %v25 = vsel %vm24, %v23, 0.0
    %26 = vadd.xlane.f32.xlu0 %v25
    %v27 = vpop.xlane.xlu0 %26
    %v28 = vmax.f32 %v27, 1e-16
    %v29 = vrsqrt.pop %v28
    %v30 = vmul.f32 %v29, %v28
    %v31 = vmul.f32 %v30, %v29
    %v32 = vmul.f32 0.5, %v31
    %v33 = vsub.f32 1.5, %v32
    %v34 = vmul.f32 %v29, %v33
    %vm35 = vweird.f32 %v28
    %vm36 = vweird.f32 %v29
    %vm37 = vmor %vm35, %vm36
    %v38 = vsel %vm37, %v29, %v34
    %vm39 = vcmask 7168
    %40 = vst.msk [vmem:[%s1] sm:$0xff] %vm39, %v38
    // Predicated region
    $region10: #{tpu_custom_call.1} parent=1 // pred_check
      _
    $region11: #{tpu_custom_call.1} parent=1 // pred_check_branch
      %42 = sbr.rel (0) target = $region13
    $region12: #{tpu_custom_call.1} parent=1 // pred_region
      _
    $region13: #{tpu_custom_call.1} parent=1 // pred_fallthru
      _
    // Predicated region
    $region14: #{tpu_custom_call.1} parent=1 // pred_check
      _
    $region15: #{tpu_custom_call.1} parent=1 // pred_check_branch
      %44 = sbr.rel (0) target = $region17
    $region16: #{tpu_custom_call.1} parent=1 // pred_region
      _
    $region17: #{tpu_custom_call.1} parent=1 // pred_fallthru
      _
    %45 = vsyncpa [#allocation3], 1

</llo_original>
